<compile_context>
chip_gen: v7x
topology: tpu7x:2x2x1
jax: 0.10.0
libtpu: 0.0.40
codegen_flags: <defaults>
</compile_context>

<pallas_src>
import math

import jax
import jax.numpy as jnp
from jax.experimental import pallas as pl
from jax.experimental.pallas import tpu as pltpu

_LANE = 128
# Per-block-buffer byte budget.  8 MiB amortizes the ~0.35 us grid-step
# overhead to a few percent on every generation (v5e ~0.8, v6e ~1.4,
# v7x ~3.2 TB/s HBM) while 2x-in + 2x-out double buffering (~32 MiB live)
# stays inside the explicit VMEM limit requested below.
_BLOCK_BYTES = 8 << 20
# Cap for the scoped-VMEM request: comfortably below v7x's 64 MiB physical
# VMEM; v5e/v6e have 128 MiB physical so the same cap is safe there too.
_VMEM_LIMIT_CAP = 48 << 20
# Inputs smaller than this skip the Pallas call (pure launch/pipeline
# overhead for a copy this small) and use the metadata-only XLA reshape.
_SMALL_FASTPATH_BYTES = 1 << 20


def _sublane_pack(dtype) -> int:
    """Rows-per-vreg packing factor for the dtype (8 fp32, 16 bf16, 32 int8)."""
    itemsize = jnp.dtype(dtype).itemsize
    if itemsize >= 4:
        return 8
    if itemsize == 2:
        return 16
    return 32


def _copy_kernel(x_ref, o_ref):
    # Identity copy of the current (tile_rows, 128) tile; the real work is the
    # HBM<->VMEM pipeline that Pallas generates around it.
    o_ref[...] = x_ref[...]


def _resolve_shape(shape, total):
    """Resolve a single -1 dimension exactly like torch.Tensor.view does."""
    shape = tuple(int(d) for d in shape)
    if -1 in shape:
        assert shape.count(-1) == 1, "only one -1 dim allowed"
        known = math.prod(d for d in shape if d != -1)
        assert known > 0 and total % known == 0, (
            f"view of shape {shape} incompatible with {total} elements")
        shape = tuple(total // known if d == -1 else d for d in shape)
    assert math.prod(shape) == total, (
        f"view of shape {shape} incompatible with input of {total} elements")
    return shape


def view_of_shape(x, shape, *, force_copy: bool = True,
                  min_pallas_bytes: int = _SMALL_FASTPATH_BYTES):
    """Pallas equivalent of torch.Tensor.view(shape) for contiguous inputs.

    Default / fast path is the metadata-only XLA reshape (the true torch.view
    semantics).  force_copy=True streams the bytes once through a Pallas
    identity-copy kernel and returns a genuinely fresh contiguous buffer,
    provided the element count is a multiple of 128 and the tensor is big
    enough to amortize the kernel launch; otherwise the reshape is returned.
    """
    total = math.prod(x.shape)
    shape = _resolve_shape(shape, total)

    itemsize = jnp.dtype(x.dtype).itemsize
    nbytes = total * itemsize

    if (not force_copy or total == 0 or nbytes < min_pallas_bytes
            or total % _LANE != 0):
        # torch .view is metadata-only; the XLA reshape is the exact
        # equivalent with zero extra HBM passes.  Ragged element counts
        # (total % 128 != 0) deliberately take this path instead of paying
        # pad/slice passes around a copy.
        # TODO(synk): add a masked-tail Pallas path if a forced fresh copy of a
        # non-128-multiple element count is ever required.
        return x.reshape(shape)

    pack = _sublane_pack(x.dtype)
    rows = total // _LANE
    # Metadata-only reshape to the lane-dense (rows, 128) slab; same row-major
    # element order torch's contiguous .view() uses.
    slab = x.reshape(rows, _LANE)
    slab_bytes = rows * _LANE * itemsize

    # Tile sizing: one block if the whole slab fits the budget (a block equal
    # to the full array dims satisfies the (8,128) rule for any `rows`);
    # otherwise the largest multiple-of-`pack` row count within the budget.
    # A ragged last block (rows % tile_rows != 0) is masked by Pallas.
    if slab_bytes <= _BLOCK_BYTES:
        tile_rows = rows
    else:
        tile_rows = max(pack, (_BLOCK_BYTES // (_LANE * itemsize)) // pack * pack)
    tile_bytes = tile_rows * _LANE * itemsize

    # 2x input + 2x output double buffering plus headroom, capped so the
    # request always fits v7x's 64 MiB physical VMEM.
    vmem_limit = int(min(_VMEM_LIMIT_CAP, max(16 << 20, 4 * tile_bytes + (4 << 20))))

    grid = (pl.cdiv(rows, tile_rows),)

    out_slab = pl.pallas_call(
        _copy_kernel,
        out_shape=jax.ShapeDtypeStruct((rows, _LANE), x.dtype),
        grid_spec=pltpu.PrefetchScalarGridSpec(
            num_scalar_prefetch=0,
            grid=grid,
            in_specs=[pl.BlockSpec((tile_rows, _LANE), lambda i: (i, 0))],
            out_specs=pl.BlockSpec((tile_rows, _LANE), lambda i: (i, 0)),
        ),
        compiler_params=pltpu.CompilerParams(
            # Shards the single streaming axis across both TensorCores on v7x;
            # a no-op on single-TC v5e/v6e.
            # TODO(synk): switch to pltpu.CORE_PARALLEL if a v7x profile shows
            # one TensorCore idle with plain PARALLEL.
            dimension_semantics=(pltpu.PARALLEL,),
            vmem_limit_bytes=vmem_limit,
        ),
        # Pure streaming copy: 0 flops, read + write of the whole slab.
        cost_estimate=pl.CostEstimate(
            flops=0, transcendentals=0, bytes_accessed=2 * slab_bytes),
    )(slab)

    # Fresh contiguous buffer -> final reshape is metadata-only.
    return out_slab.reshape(shape)


if __name__ == "__main__":
    key = jax.random.PRNGKey(0)
    # Small NCHW-ish input: (batch=2, channels=4, H=16, W=16) = 2048 elements.
    x = jax.random.normal(key, (2, 4, 16, 16), dtype=jnp.float32)

    # Target view shape, same element count (flatten the spatial dims).
    target_shape = (2, 4, 256)

    # Force the Pallas streaming-copy path even though the input is tiny
    # (min_pallas_bytes=0 disables the small-size fast path for this demo).
    y = view_of_shape(x, target_shape, force_copy=True, min_pallas_bytes=0)
    jax.block_until_ready(y)

    # Correctness vs plain reshape semantics (== torch .view on contiguous).
    ref = x.reshape(target_shape)
    assert y.shape == tuple(target_shape), (y.shape, target_shape)
    assert y.dtype == x.dtype
    assert bool(jnp.all(y == ref))

    # Default path (small input -> metadata-only reshape fast path), with a -1
    # dim resolved like torch.view.
    y_fast = view_of_shape(x, (-1, 16, 16))
    jax.block_until_ready(y_fast)
    assert y_fast.shape == (8, 16, 16)
    assert bool(jnp.all(y_fast == x.reshape(8, 16, 16)))

    print("KERNEL_OK")
</pallas_src>

<mosaic_0001>
module attributes {stable_mosaic.version = 11 : i64} {
  func.func @_copy_kernel(%arg0: i32, %arg1: memref<16x128xf32, #tpu.memory_space<vmem>>, %arg2: memref<16x128xf32, #tpu.memory_space<vmem>>) attributes {dimension_semantics = [#tpu.dimension_semantics<parallel>], iteration_bounds = array<i64: 1>, scalar_prefetch = 0 : i64, scratch_operands = 0 : i64, tpu.core_type = #tpu.core_type<tc>, window_params = [{transform_indices = @transform_0, window_bounds = array<i64: 16, 128>}, {transform_indices = @transform_1, window_bounds = array<i64: 16, 128>}]} {
    %c0 = arith.constant 0 : index
    %c0_0 = arith.constant 0 : index
    %0 = vector.load %arg1[%c0, %c0_0] : memref<16x128xf32, #tpu.memory_space<vmem>>, vector<16x128xf32>
    %c0_1 = arith.constant 0 : index
    %c0_2 = arith.constant 0 : index
    %1 = vector.load %arg2[%c0_1, %c0_2] : memref<16x128xf32, #tpu.memory_space<vmem>>, vector<16x128xf32>
    tpu.vector_store %arg2[%c0_1, %c0_2], %0 {strides = array<i32>} : memref<16x128xf32, #tpu.memory_space<vmem>>, vector<16x128xf32>,
    return
  }
  func.func @transform_0(%arg0: i32) -> (i32, i32) {
    %c0_i32 = arith.constant 0 : i32
    %c0_i32_0 = arith.constant 0 : i32
    return %arg0, %c0_i32 : i32, i32
  }
  func.func @transform_1(%arg0: i32) -> (i32, i32) {
    %c0_i32 = arith.constant 0 : i32
    %c0_i32_0 = arith.constant 0 : i32
    return %arg0, %c0_i32 : i32, i32
  }
}

</mosaic_0001>

<llo_original>
// kernel: tpu_custom_call.1
$region0: #{tpu_custom_call.1}
  #allocation0 [shape = 'u32[]', space=smem, size = 0x4, offset = 0x4, fixed_abs, tag = 'smem constant byte address 0x4 - core index']
  #allocation1 [shape = 'u32[144,128]{1,0:T(1,128)}', space=vmem, size = 0x12000, scoped, tag = 'internal scratch']
  %s0 = inlined_call_operand.hbm [shape: f32[16,128], index: 0, kind: input, shape index: {}]
  %s1 = inlined_call_operand.hbm [shape: f32[16,128], index: 1, kind: output, shape index: {}]
  %s2 = sld [smem:[#allocation0]]
  $region18: #{tpu_custom_call.1} parent=0
    _
  %s4 = ssub.s32 1, %s2
  %s5 = scalar_select 0, %s4, %s2
  $region1: #{tpu_custom_call.1} parent=0
    #allocation2 [shape = 'u8[8192]{0}', space=vmem, size = 0x2000, scoped, tag = 'input window, operand 0, single buffered']
    #allocation3 [shape = 's32[1]{0}', space=sflag, size = 0x4, scoped, tag = 'scoped memory for tpu_custom_call.1']
    #allocation4 [shape = 's32[1]{0}', space=sflag, size = 0x4, scoped, tag = 'scoped memory for tpu_custom_call.1']
    #allocation5 [shape = 'u8[8192]{0}', space=vmem, size = 0x2000, scoped, tag = 'output window, operand 0, single buffered']
    %6 = vsyncpa [#allocation3], 0
    %7 = vsyncpa [#allocation4], 0
    // Predicated region
    $region2: #{tpu_custom_call.1} parent=1 // pred_check
      _
    $region3: #{tpu_custom_call.1} parent=1 // pred_check_branch
      %9 = sbr.rel (0) target = $region5
    $region4: #{tpu_custom_call.1} parent=1 // pred_region
      %s11 = ssub.s32 256, 256
      %12 = vsyncadd [#allocation3], %s11
      %s13 = sshll.u32 [#allocation2], 4
      %s14 = int_to_ptr.vmem [resolvable:$true] %s13
      %19 = dma.hbm_to_vmem [thread:$0]  %s0, 256, %s14, [#allocation3], 128, 128, 8
    $region5: #{tpu_custom_call.1} parent=1 // pred_fallthru
      _
    // Predicated region
    $region6: #{tpu_custom_call.1} parent=1 // pred_check
      _
    $region7: #{tpu_custom_call.1} parent=1 // pred_check_branch
      %21 = sbr.rel (0) target = $region9
    $region8: #{tpu_custom_call.1} parent=1 // pred_region
      %22 = dma.done [#allocation3], 256
    $region9: #{tpu_custom_call.1} parent=1 // pred_fallthru
      _
    %v23 = vld [vmem:[#allocation2] sm:$0xff]
    %v24 = vld [vmem:[#allocation2 + $0x8] sm:$0xff]
    %25 = vst [vmem:[#allocation5] sm:$0xff] %v23
    %26 = vst [vmem:[#allocation5 + $0x8] sm:$0xff] %v24
    // Predicated region
    $region10: #{tpu_custom_call.1} parent=1 // pred_check
      _
    $region11: #{tpu_custom_call.1} parent=1 // pred_check_branch
      %28 = sbr.rel (0) target = $region13
    $region12: #{tpu_custom_call.1} parent=1 // pred_region
      %s30 = ssub.s32 256, 256
      %31 = vsyncadd [#allocation4], %s30
      %s32 = sshll.u32 [#allocation5], 4
      %s33 = int_to_ptr.vmem [resolvable:$true] %s32
      %38 = dma.vmem_to_hbm [thread:$0]  %s33, 256, %s1, [#allocation4], 128, 128, 8
    $region13: #{tpu_custom_call.1} parent=1 // pred_fallthru
      _
    // Predicated region
    $region14: #{tpu_custom_call.1} parent=1 // pred_check
      _
    $region15: #{tpu_custom_call.1} parent=1 // pred_check_branch
      %40 = sbr.rel (0) target = $region17
    $region16: #{tpu_custom_call.1} parent=1 // pred_region
      %41 = dma.done [#allocation4], 256
    $region17: #{tpu_custom_call.1} parent=1 // pred_fallthru
      _
    %42 = vsyncpa [#allocation3], 1
    %43 = vsyncpa [#allocation4], 1

</llo_original>
